<compile_context>
chip_gen: v7x
topology: tpu7x:2x2x1
jax: 0.10.0
libtpu: 0.0.40
codegen_flags: <defaults>
</compile_context>

<pallas_src>
import jax
import jax.numpy as jnp
from jax.experimental import pallas as pl
from jax.experimental.pallas import tpu as pltpu

_NUM_LABELS = 2
_LANE = 128  # lane-dense output padding


def _head_kernel(xa_ref, xb_ref, wt_ref, wb_ref, b1_ref, wo_ref, bo_ref, o_ref):
    # xa/xb: (TILE_M, H) f32   wt/wb: (H, H) bf16   b1: (1, H) f32
    # wo:    (H, 128)   bf16   bo:    (1, 128) f32  o:  (TILE_M, 128) f32
    xa = xa_ref[...].astype(jnp.bfloat16)
    xb = xb_ref[...].astype(jnp.bfloat16)
    h = (jnp.dot(xa, wt_ref[...], preferred_element_type=jnp.float32)
         + jnp.dot(xb, wb_ref[...], preferred_element_type=jnp.float32)
         + b1_ref[...])
    h = jnp.tanh(h).astype(jnp.bfloat16)
    y = jnp.dot(h, wo_ref[...], preferred_element_type=jnp.float32) + bo_ref[...]
    o_ref[...] = y.astype(o_ref.dtype)


def _pick_tile_m(M, tile_m):
    """Row tile: multiple of 8 that (preferably) divides M, else full extent."""
    if M % 8 != 0:
        return M
    t = max(8, (min(tile_m, M) // 8) * 8)
    # Walk down in steps of 8 to find an even divisor (bounded, tiny loop).
    while t > 8 and M % t != 0:
        t -= 8
    return t


def clone_roberta_classification_head(features, w_dense, b_dense, w_out, b_out,
                                      *, tile_m=256):
    """features: (B, S, H) f32.  Weights stored transposed (in, out).
    Returns logits (B//2, 2) f32."""
    B, S, H = features.shape
    assert B % 2 == 0, "batch must contain an even number of sequences (pairs)"
    M = B // 2

    tile_m = _pick_tile_m(M, tile_m)
    num_tiles = pl.cdiv(M, tile_m)

    # --- x stream: fuse CLS gather into BlockSpecs when lane-aligned ----------
    if H % _LANE == 0:
        # Free reshape: pair p owns one contiguous (2*S*H) row.
        # CLS of 1st element -> cols [0, H); CLS of 2nd -> cols [S*H, S*H + H).
        x2 = features.reshape(M, 2 * S * H)
        xa, xb = x2, x2
        col_a, col_b = 0, S          # block-column indices (block width = H)
    else:
        # Fallback (H not lane-aligned): materialize the CLS slice in XLA.
        x = features[:, 0, :].reshape(M, 2 * H)
        xa, xb = x[:, :H], x[:, H:]
        col_a, col_b = 0, 0

    # --- weights: split dense into pair halves, bf16, pad out_proj lane-dense -
    w_top = w_dense[:H, :].astype(jnp.bfloat16)          # (H, H)
    w_bot = w_dense[H:, :].astype(jnp.bfloat16)          # (H, H)
    b1 = b_dense.reshape(1, H).astype(jnp.float32)       # (1, H)
    w_out_p = jnp.zeros((H, _LANE), jnp.bfloat16).at[:, :_NUM_LABELS].set(
        w_out.astype(jnp.bfloat16))                      # (H, 128)
    b_out_p = jnp.zeros((1, _LANE), jnp.float32).at[:, :_NUM_LABELS].set(
        b_out.reshape(1, _NUM_LABELS).astype(jnp.float32))  # (1, 128)

    out = pl.pallas_call(
        _head_kernel,
        out_shape=jax.ShapeDtypeStruct((M, _LANE), jnp.float32),
        grid=(num_tiles,),
        in_specs=[
            pl.BlockSpec((tile_m, H), lambda i: (i, col_a)),   # x (1st of pair)
            pl.BlockSpec((tile_m, H), lambda i: (i, col_b)),   # x (2nd of pair)
            pl.BlockSpec((H, H), lambda i: (0, 0)),            # W_dense top
            pl.BlockSpec((H, H), lambda i: (0, 0)),            # W_dense bottom
            pl.BlockSpec((1, H), lambda i: (0, 0)),            # b_dense
            pl.BlockSpec((H, _LANE), lambda i: (0, 0)),        # W_out (padded)
            pl.BlockSpec((1, _LANE), lambda i: (0, 0)),        # b_out (padded)
        ],
        out_specs=pl.BlockSpec((tile_m, _LANE), lambda i: (i, 0)),
        compiler_params=pltpu.CompilerParams(
            dimension_semantics=("parallel",),
            vmem_limit_bytes=32 * 1024 * 1024,
        ),
    )(xa, xb, w_top, w_bot, b1, w_out_p, b_out_p)

    return out[:, :_NUM_LABELS]


def _reference(features, w_dense, b_dense, w_out, b_out):
    B, S, H = features.shape
    x = features[:, 0, :].reshape(B // 2, 2 * H)
    h = jnp.tanh(x @ w_dense + b_dense)
    return h @ w_out + b_out


if __name__ == "__main__":
    # Small config consistent with the module (lane-aligned hidden so the fused
    # CLS-gather path is exercised; production CodeBERT H=768 is also aligned).
    H, S, B = 128, 8, 32            # -> M = 16 pair rows, 2 grid tiles of 8

    key = jax.random.PRNGKey(0)
    k_feat, k_w1, k_b1, k_w2, k_b2 = jax.random.split(key, 5)

    features = jax.random.normal(k_feat, (B, S, H), dtype=jnp.float32)

    # Deterministic synthetic parameters; Linear weights stored transposed
    # (in_features, out_features).
    w_dense = (jax.random.normal(k_w1, (2 * H, H), dtype=jnp.float32)
               * (1.0 / jnp.sqrt(2.0 * H)))
    b_dense = jax.random.normal(k_b1, (H,), dtype=jnp.float32) * 0.02
    w_out = (jax.random.normal(k_w2, (H, _NUM_LABELS), dtype=jnp.float32)
             * (1.0 / jnp.sqrt(float(H))))
    b_out = jax.random.normal(k_b2, (_NUM_LABELS,), dtype=jnp.float32) * 0.02

    logits = clone_roberta_classification_head(
        features, w_dense, b_dense, w_out, b_out, tile_m=8)
    logits = jax.block_until_ready(logits)

    ref = _reference(features, w_dense, b_dense, w_out, b_out)
    assert logits.shape == (B // 2, _NUM_LABELS)
    # bf16 MXU path -> loosened tolerance vs the f32 reference.
    assert jnp.allclose(logits, ref, atol=3e-2, rtol=3e-2), (
        f"mismatch vs reference, max abs err = {jnp.max(jnp.abs(logits - ref))}")

    print("KERNEL_OK")
</pallas_src>

<mosaic_0001>
module attributes {stable_mosaic.version = 11 : i64} {
  func.func @_head_kernel(%arg0: i32, %arg1: memref<8x128xf32, #tpu.memory_space<vmem>>, %arg2: memref<8x128xf32, #tpu.memory_space<vmem>>, %arg3: memref<128x128xbf16, #tpu.memory_space<vmem>>, %arg4: memref<128x128xbf16, #tpu.memory_space<vmem>>, %arg5: memref<1x128xf32, #tpu.memory_space<vmem>>, %arg6: memref<128x128xbf16, #tpu.memory_space<vmem>>, %arg7: memref<1x128xf32, #tpu.memory_space<vmem>>, %arg8: memref<8x128xf32, #tpu.memory_space<vmem>>) attributes {dimension_semantics = [#tpu.dimension_semantics<parallel>], iteration_bounds = array<i64: 2>, scalar_prefetch = 0 : i64, scratch_operands = 0 : i64, tpu.core_type = #tpu.core_type<tc>, window_params = [{transform_indices = @transform_0, window_bounds = array<i64: 8, 128>}, {transform_indices = @transform_1, window_bounds = array<i64: 8, 128>}, {pipeline_mode = #tpu.pipeline_mode<synchronous>, transform_indices = @transform_2, window_bounds = array<i64: 128, 128>}, {pipeline_mode = #tpu.pipeline_mode<synchronous>, transform_indices = @transform_3, window_bounds = array<i64: 128, 128>}, {pipeline_mode = #tpu.pipeline_mode<synchronous>, transform_indices = @transform_4, window_bounds = array<i64: 1, 128>}, {pipeline_mode = #tpu.pipeline_mode<synchronous>, transform_indices = @transform_5, window_bounds = array<i64: 128, 128>}, {pipeline_mode = #tpu.pipeline_mode<synchronous>, transform_indices = @transform_6, window_bounds = array<i64: 1, 128>}, {transform_indices = @transform_7, window_bounds = array<i64: 8, 128>}]} {
    %c0 = arith.constant 0 : index
    %c0_0 = arith.constant 0 : index
    %0 = vector.load %arg1[%c0, %c0_0] : memref<8x128xf32, #tpu.memory_space<vmem>>, vector<8x128xf32>
    %1 = arith.truncf %0 : vector<8x128xf32> to vector<8x128xbf16>
    %c0_1 = arith.constant 0 : index
    %c0_2 = arith.constant 0 : index
    %2 = vector.load %arg2[%c0_1, %c0_2] : memref<8x128xf32, #tpu.memory_space<vmem>>, vector<8x128xf32>
    %3 = arith.truncf %2 : vector<8x128xf32> to vector<8x128xbf16>
    %c0_3 = arith.constant 0 : index
    %c0_4 = arith.constant 0 : index
    %4 = vector.load %arg3[%c0_3, %c0_4] : memref<128x128xbf16, #tpu.memory_space<vmem>>, vector<128x128xbf16>
    %cst = arith.constant dense<0.000000e+00> : vector<8x128xf32>
    %5 = tpu.matmul %1, %4, %cst {dimension_numbers = #tpu.dot_dimension_numbers<[1], [0], [0], [1], [0, 0, 1, 1], [], []>} : vector<8x128xbf16>, vector<128x128xbf16>, vector<8x128xf32> -> vector<8x128xf32>
    %c0_5 = arith.constant 0 : index
    %c0_6 = arith.constant 0 : index
    %6 = vector.load %arg4[%c0_5, %c0_6] : memref<128x128xbf16, #tpu.memory_space<vmem>>, vector<128x128xbf16>
    %cst_7 = arith.constant dense<0.000000e+00> : vector<8x128xf32>
    %7 = tpu.matmul %3, %6, %cst_7 {dimension_numbers = #tpu.dot_dimension_numbers<[1], [0], [0], [1], [0, 0, 1, 1], [], []>} : vector<8x128xbf16>, vector<128x128xbf16>, vector<8x128xf32> -> vector<8x128xf32>
    %8 = arith.addf %5, %7 : vector<8x128xf32>
    %c0_8 = arith.constant 0 : index
    %c0_9 = arith.constant 0 : index
    %9 = vector.load %arg5[%c0_8, %c0_9] : memref<1x128xf32, #tpu.memory_space<vmem>>, vector<1x128xf32>
    %10 = vector.broadcast %9 : vector<1x128xf32> to vector<8x128xf32>
    %11 = arith.addf %8, %10 : vector<8x128xf32>
    %12 = math.tanh %11 : vector<8x128xf32>
    %13 = arith.truncf %12 : vector<8x128xf32> to vector<8x128xbf16>
    %c0_10 = arith.constant 0 : index
    %c0_11 = arith.constant 0 : index
    %14 = vector.load %arg6[%c0_10, %c0_11] : memref<128x128xbf16, #tpu.memory_space<vmem>>, vector<128x128xbf16>
    %cst_12 = arith.constant dense<0.000000e+00> : vector<8x128xf32>
    %15 = tpu.matmul %13, %14, %cst_12 {dimension_numbers = #tpu.dot_dimension_numbers<[1], [0], [0], [1], [0, 0, 1, 1], [], []>} : vector<8x128xbf16>, vector<128x128xbf16>, vector<8x128xf32> -> vector<8x128xf32>
    %c0_13 = arith.constant 0 : index
    %c0_14 = arith.constant 0 : index
    %16 = vector.load %arg7[%c0_13, %c0_14] : memref<1x128xf32, #tpu.memory_space<vmem>>, vector<1x128xf32>
    %17 = vector.broadcast %16 : vector<1x128xf32> to vector<8x128xf32>
    %18 = arith.addf %15, %17 : vector<8x128xf32>
    %c0_15 = arith.constant 0 : index
    %c0_16 = arith.constant 0 : index
    %19 = vector.load %arg8[%c0_15, %c0_16] : memref<8x128xf32, #tpu.memory_space<vmem>>, vector<8x128xf32>
    tpu.vector_store %arg8[%c0_15, %c0_16], %18 {strides = array<i32>} : memref<8x128xf32, #tpu.memory_space<vmem>>, vector<8x128xf32>,
    return
  }
  func.func @transform_0(%arg0: i32) -> (i32, i32) {
    %c0_i32 = arith.constant 0 : i32
    %c0_i32_0 = arith.constant 0 : i32
    return %arg0, %c0_i32 : i32, i32
  }
  func.func @transform_1(%arg0: i32) -> (i32, i32) {
    %c8_i32 = arith.constant 8 : i32
    %c0_i32 = arith.constant 0 : i32
    return %arg0, %c8_i32 : i32, i32
  }
  func.func @transform_2(%arg0: i32) -> (i32, i32) {
    %c0_i32 = arith.constant 0 : i32
    %c0_i32_0 = arith.constant 0 : i32
    %c0_i32_1 = arith.constant 0 : i32
    return %c0_i32, %c0_i32_0 : i32, i32
  }
  func.func @transform_3(%arg0: i32) -> (i32, i32) {
    %c0_i32 = arith.constant 0 : i32
    %c0_i32_0 = arith.constant 0 : i32
    %c0_i32_1 = arith.constant 0 : i32
    return %c0_i32, %c0_i32_0 : i32, i32
  }
  func.func @transform_4(%arg0: i32) -> (i32, i32) {
    %c0_i32 = arith.constant 0 : i32
    %c0_i32_0 = arith.constant 0 : i32
    %c0_i32_1 = arith.constant 0 : i32
    return %c0_i32, %c0_i32_0 : i32, i32
  }
  func.func @transform_5(%arg0: i32) -> (i32, i32) {
    %c0_i32 = arith.constant 0 : i32
    %c0_i32_0 = arith.constant 0 : i32
    %c0_i32_1 = arith.constant 0 : i32
    return %c0_i32, %c0_i32_0 : i32, i32
  }
  func.func @transform_6(%arg0: i32) -> (i32, i32) {
    %c0_i32 = arith.constant 0 : i32
    %c0_i32_0 = arith.constant 0 : i32
    %c0_i32_1 = arith.constant 0 : i32
    return %c0_i32, %c0_i32_0 : i32, i32
  }
  func.func @transform_7(%arg0: i32) -> (i32, i32) {
    %c0_i32 = arith.constant 0 : i32
    %c0_i32_0 = arith.constant 0 : i32
    return %arg0, %c0_i32 : i32, i32
  }
}

</mosaic_0001>

<llo_original>
// kernel: tpu_custom_call.1
$region0: #{tpu_custom_call.1}
  #allocation0 [shape = 'u32[]', space=smem, size = 0x4, offset = 0x4, fixed_abs, tag = 'smem constant byte address 0x4 - core index']
  #allocation1 [shape = 'u32[144,128]{1,0:T(1,128)}', space=vmem, size = 0x12000, scoped, tag = 'internal scratch']
  %s0 = inlined_call_operand.hbm [shape: f32[16,2048], index: 0, kind: input, shape index: {}]
  %s1 = inlined_call_operand.hbm [shape: f32[16,2048], index: 1, kind: input, shape index: {}]
  %s2 = inlined_call_operand.hbm [shape: bf16[128,128], index: 2, kind: input, shape index: {}]
  %s3 = inlined_call_operand.hbm [shape: bf16[128,128], index: 3, kind: input, shape index: {}]
  %s4 = inlined_call_operand.vmem [shape: f32[1,128], index: 4, kind: input, shape index: {}]
  %s5 = inlined_call_operand.hbm [shape: bf16[128,128], index: 5, kind: input, shape index: {}]
  %s6 = inlined_call_operand.vmem [shape: f32[1,128], index: 6, kind: input, shape index: {}]
  %s7 = inlined_call_operand.hbm [shape: f32[16,128], index: 7, kind: output, shape index: {}]
  %s8 = sld [smem:[#allocation0]]
  $region81: #{tpu_custom_call.1} parent=0
    _
  %s10 = ssub.s32 1, %s8
  %s11 = scalar_select 0, %s10, %s8
  $region1: #{tpu_custom_call.1} parent=0
    #allocation2 [shape = 'u8[8192]{0}', space=vmem, size = 0x2000, scoped, tag = 'input window, operand 0']
    #allocation3 [shape = 's32[2]{0}', space=sflag, size = 0x8, scoped, tag = 'scoped memory for tpu_custom_call.1']
    #allocation4 [shape = 's32[2]{0}', space=sflag, size = 0x8, scoped, tag = 'scoped memory for tpu_custom_call.1']
    #allocation5 [shape = 'u8[8192]{0}', space=vmem, size = 0x2000, scoped, tag = 'input window, operand 1']
    #allocation6 [shape = 's32[2]{0}', space=sflag, size = 0x8, scoped, tag = 'scoped memory for tpu_custom_call.1']
    #allocation7 [shape = 'u8[32768]{0}', space=vmem, size = 0x8000, scoped, tag = 'input window, operand 2, single buffered']
    #allocation8 [shape = 'u8[32768]{0}', space=vmem, size = 0x8000, scoped, tag = 'input window, operand 3, single buffered']
    #allocation9 [shape = 's32[1]{0}', space=sflag, size = 0x4, scoped, tag = 'scoped memory for tpu_custom_call.1']
    #allocation10 [shape = 'u8[32768]{0}', space=vmem, size = 0x8000, scoped, tag = 'input window, operand 5, single buffered']
    #allocation11 [shape = 'u8[8192]{0}', space=vmem, size = 0x2000, scoped, tag = 'output window, operand 0']
    %12 = vsyncpa [#allocation3], 0
    %s13 = scalar_lea.sflag [#allocation3], 1
    %14 = vsyncpa %s13, 0
    %15 = vsyncpa [#allocation6], 0
    %s16 = scalar_lea.sflag [#allocation6], 1
    %17 = vsyncpa %s16, 0
    %18 = vsyncpa [#allocation9], 0
    %19 = vsyncpa [#allocation4], 0
    %s20 = scalar_lea.sflag [#allocation4], 1
    %21 = vsyncpa %s20, 0
    loop: start=0, step=1, limit=4
    $region2: #{tpu_custom_call.1} parent=1 // loop_pre_header
      _
    $region3: #{tpu_custom_call.1} parent=1 // loop_header
      %s23 = sphi 0, %s27
      %p24 = scmp.ge.s32.totalorder %s23, 4
      %s33 = sphi 0, %s35
      %s36 = sphi 0, %s33
      %s37 = sphi 0, %s36
      %s53 = sphi 0, %s37
      %s59 = sphi 0, %s61
      %s62 = sphi 0, %s59
      %s63 = sphi 0, %s62
      %s79 = sphi 0, %s63
      %s83 = sphi 0, %s83
      %s85 = sphi 0, %s83
      %s86 = sphi 0, %s85
      %s100 = sphi 0, %s86
      %s104 = sphi 0, %s104
      %s106 = sphi 0, %s104
      %s107 = sphi 0, %s106
      %s121 = sphi 0, %s107
      %s125 = sphi 0, %s125
      %s127 = sphi 0, %s125
      %s128 = sphi 0, %s127
      %s142 = sphi 0, %s128
      %s146 = sphi 0, %s146
      %s148 = sphi 0, %s146
      %s149 = sphi 0, %s148
      %s163 = sphi 0, %s149
      %s167 = sphi 0, %s167
      %s169 = sphi 0, %s167
      %s170 = sphi 0, %s169
      %s184 = sphi 0, %s170
      %s190 = sphi 0, %s192
      %s193 = sphi 0, %s190
      %s194 = sphi 0, %s193
      %s210 = sphi 0, %s194
    $region4: #{tpu_custom_call.1} parent=1 // loop_header_branch
      %26 = sbr.rel (%p24) target = $region8
    $region5: #{tpu_custom_call.1} parent=1 // loop_body
      %s28 = ssub.s32 %s23, 1
      %s29 = ssub.s32 %s23, 2
      %s30 = sadd.s32 %s23, 1
      %s31 = ssub.s32 %s23, %s30
      %p32 = scmp.eq.s32.totalorder %s31, 0
      %s34 = sadd.s32 %s33, 1
      %s35 = scalar_select %p32, %s33, %s34
      %p38 = pneg %p32
      %p39 = scmp.eq.s32.totalorder %s23, 1
      %p40 = por %p38, %p39
      %p41 = scmp.ne.s32.totalorder %s33, %s36
      %p42 = scmp.eq.s32.totalorder %s23, 0
      %p43 = por %p41, %p42
      %p44 = scmp.ne.s32.totalorder %s33, %s36
      %p45 = scmp.eq.s32.totalorder %s28, 1
      %p46 = por %p44, %p45
      %p47 = scmp.ne.s32.totalorder %s36, %s37
      %p48 = scmp.eq.s32.totalorder %s28, 0
      %p49 = por %p47, %p48
      %p50 = scmp.ne.s32.totalorder %s36, %s37
      %p51 = scmp.eq.s32.totalorder %s29, 1
      %p52 = por %p50, %p51
      %p54 = scmp.ne.s32.totalorder %s37, %s53
      %p55 = scmp.eq.s32.totalorder %s29, 0
      %p56 = por %p54, %p55
      %s57 = ssub.s32 %s23, %s30
      %p58 = scmp.eq.s32.totalorder %s57, 0
      %s60 = sadd.s32 %s59, 1
      %s61 = scalar_select %p58, %s59, %s60
      %p64 = pneg %p58
      %p65 = scmp.eq.s32.totalorder %s23, 1
      %p66 = por %p64, %p65
      %p67 = scmp.ne.s32.totalorder %s59, %s62
      %p68 = scmp.eq.s32.totalorder %s23, 0
      %p69 = por %p67, %p68
      %p70 = scmp.ne.s32.totalorder %s59, %s62
      %p71 = scmp.eq.s32.totalorder %s28, 1
      %p72 = por %p70, %p71
      %p73 = scmp.ne.s32.totalorder %s62, %s63
      %p74 = scmp.eq.s32.totalorder %s28, 0
      %p75 = por %p73, %p74
      %p76 = scmp.ne.s32.totalorder %s62, %s63
      %p77 = scmp.eq.s32.totalorder %s29, 1
      %p78 = por %p76, %p77
      %p80 = scmp.ne.s32.totalorder %s63, %s79
      %p81 = scmp.eq.s32.totalorder %s29, 0
      %p82 = por %p80, %p81
      %s84 = sadd.s32 %s83, 1
      %p87 = scmp.eq.s32.totalorder %s23, 1
      %p88 = scmp.ne.s32.totalorder %s83, %s85
      %p89 = scmp.eq.s32.totalorder %s23, 0
      %p90 = por %p88, %p89
      %p91 = scmp.ne.s32.totalorder %s83, %s85
      %p92 = scmp.eq.s32.totalorder %s28, 1
      %p93 = por %p91, %p92
      %p94 = scmp.ne.s32.totalorder %s85, %s86
      %p95 = scmp.eq.s32.totalorder %s28, 0
      %p96 = por %p94, %p95
      %p97 = scmp.ne.s32.totalorder %s85, %s86
      %p98 = scmp.eq.s32.totalorder %s29, 1
      %p99 = por %p97, %p98
      %p101 = scmp.ne.s32.totalorder %s86, %s100
      %p102 = scmp.eq.s32.totalorder %s29, 0
      %p103 = por %p101, %p102
      %s105 = sadd.s32 %s104, 1
      %p108 = scmp.eq.s32.totalorder %s23, 1
      %p109 = scmp.ne.s32.totalorder %s104, %s106
      %p110 = scmp.eq.s32.totalorder %s23, 0
      %p111 = por %p109, %p110
      %p112 = scmp.ne.s32.totalorder %s104, %s106
      %p113 = scmp.eq.s32.totalorder %s28, 1
      %p114 = por %p112, %p113
      %p115 = scmp.ne.s32.totalorder %s106, %s107
      %p116 = scmp.eq.s32.totalorder %s28, 0
      %p117 = por %p115, %p116
      %p118 = scmp.ne.s32.totalorder %s106, %s107
      %p119 = scmp.eq.s32.totalorder %s29, 1
      %p120 = por %p118, %p119
      %p122 = scmp.ne.s32.totalorder %s107, %s121
      %p123 = scmp.eq.s32.totalorder %s29, 0
      %p124 = por %p122, %p123
      %s126 = sadd.s32 %s125, 1
      %p129 = scmp.eq.s32.totalorder %s23, 1
      %p130 = scmp.ne.s32.totalorder %s125, %s127
      %p131 = scmp.eq.s32.totalorder %s23, 0
      %p132 = por %p130, %p131
      %p133 = scmp.ne.s32.totalorder %s125, %s127
      %p134 = scmp.eq.s32.totalorder %s28, 1
      %p135 = por %p133, %p134
      %p136 = scmp.ne.s32.totalorder %s127, %s128
      %p137 = scmp.eq.s32.totalorder %s28, 0
      %p138 = por %p136, %p137
      %p139 = scmp.ne.s32.totalorder %s127, %s128
      %p140 = scmp.eq.s32.totalorder %s29, 1
      %p141 = por %p139, %p140
      %p143 = scmp.ne.s32.totalorder %s128, %s142
      %p144 = scmp.eq.s32.totalorder %s29, 0
      %p145 = por %p143, %p144
      %s147 = sadd.s32 %s146, 1
      %p150 = scmp.eq.s32.totalorder %s23, 1
      %p151 = scmp.ne.s32.totalorder %s146, %s148
      %p152 = scmp.eq.s32.totalorder %s23, 0
      %p153 = por %p151, %p152
      %p154 = scmp.ne.s32.totalorder %s146, %s148
      %p155 = scmp.eq.s32.totalorder %s28, 1
      %p156 = por %p154, %p155
      %p157 = scmp.ne.s32.totalorder %s148, %s149
      %p158 = scmp.eq.s32.totalorder %s28, 0
      %p159 = por %p157, %p158
      %p160 = scmp.ne.s32.totalorder %s148, %s149
      %p161 = scmp.eq.s32.totalorder %s29, 1
      %p162 = por %p160, %p161
      %p164 = scmp.ne.s32.totalorder %s149, %s163
      %p165 = scmp.eq.s32.totalorder %s29, 0
      %p166 = por %p164, %p165
      %s168 = sadd.s32 %s167, 1
      %p171 = scmp.eq.s32.totalorder %s23, 1
      %p172 = scmp.ne.s32.totalorder %s167, %s169
      %p173 = scmp.eq.s32.totalorder %s23, 0
      %p174 = por %p172, %p173
      %p175 = scmp.ne.s32.totalorder %s167, %s169
      %p176 = scmp.eq.s32.totalorder %s28, 1
      %p177 = por %p175, %p176
      %p178 = scmp.ne.s32.totalorder %s169, %s170
      %p179 = scmp.eq.s32.totalorder %s28, 0
      %p180 = por %p178, %p179
      %p181 = scmp.ne.s32.totalorder %s169, %s170
      %p182 = scmp.eq.s32.totalorder %s29, 1
      %p183 = por %p181, %p182
      %p185 = scmp.ne.s32.totalorder %s170, %s184
      %p186 = scmp.eq.s32.totalorder %s29, 0
      %p187 = por %p185, %p186
      %s188 = ssub.s32 %s23, %s30
      %p189 = scmp.eq.s32.totalorder %s188, 0
      %s191 = sadd.s32 %s190, 1
      %s192 = scalar_select %p189, %s190, %s191
      %p195 = pneg %p189
      %p196 = scmp.eq.s32.totalorder %s23, 1
      %p197 = por %p195, %p196
      %p198 = scmp.ne.s32.totalorder %s190, %s193
      %p199 = scmp.eq.s32.totalorder %s23, 0
      %p200 = por %p198, %p199
      %p201 = scmp.ne.s32.totalorder %s190, %s193
      %p202 = scmp.eq.s32.totalorder %s28, 1
      %p203 = por %p201, %p202
      %p204 = scmp.ne.s32.totalorder %s193, %s194
      %p205 = scmp.eq.s32.totalorder %s28, 0
      %p206 = por %p204, %p205
      %p207 = scmp.ne.s32.totalorder %s193, %s194
      %p208 = scmp.eq.s32.totalorder %s29, 1
      %p209 = por %p207, %p208
      %p211 = scmp.ne.s32.totalorder %s194, %s210
      %p212 = scmp.eq.s32.totalorder %s29, 0
      %p213 = por %p211, %p212
      %p214 = scmp.le.s32.totalorder 1, %s23
      %p215 = scmp.lt.s32.totalorder %s23, 3
      %p216 = pnand %p214, %p215
      %p217 = pneg %p216
      // Predicated region
      $region9: #{tpu_custom_call.1} parent=5 // pred_check
        _
      $region10: #{tpu_custom_call.1} parent=5 // pred_check_branch
        %219 = sbr.rel (%p216) target = $region12
      $region11: #{tpu_custom_call.1} parent=5 // pred_region
        %s220 = ssub.s32 %s23, 1
        // Predicated region
        $region13: #{tpu_custom_call.1} parent=11 // pred_check
          %p221 = pneg %p96
        $region14: #{tpu_custom_call.1} parent=11 // pred_check_branch
          %223 = sbr.rel (%p221) target = $region16
        $region15: #{tpu_custom_call.1} parent=11 // pred_region
          %s225 = ssub.s32 1024, 1024
          %226 = vsyncadd [#allocation6], %s225
          %s227 = sshll.u32 [#allocation7], 4
          %s228 = int_to_ptr.vmem [resolvable:$true] %s227
          %233 = dma.hbm_to_vmem [thread:$0]  %s2, 1024, %s228, [#allocation6], 64, 64, 4
        $region16: #{tpu_custom_call.1} parent=11 // pred_fallthru
          _
        // Predicated region
        $region17: #{tpu_custom_call.1} parent=11 // pred_check
          %p234 = pneg %p117
        $region18: #{tpu_custom_call.1} parent=11 // pred_check_branch
          %236 = sbr.rel (%p234) target = $region20
        $region19: #{tpu_custom_call.1} parent=11 // pred_region
          %s238 = ssub.s32 1024, 1024
          %239 = vsyncadd [#allocation9], %s238
          %s240 = sshll.u32 [#allocation8], 4
          %s241 = int_to_ptr.vmem [resolvable:$true] %s240
          %246 = dma.hbm_to_vmem [thread:$0]  %s3, 1024, %s241, [#allocation9], 64, 64, 4
        $region20: #{tpu_custom_call.1} parent=11 // pred_fallthru
          _
        // Predicated region
        $region21: #{tpu_custom_call.1} parent=11 // pred_check
          %p247 = pneg %p138
        $region22: #{tpu_custom_call.1} parent=11 // pred_check_branch
          %249 = sbr.rel (%p247) target = $region24
        $region23: #{tpu_custom_call.1} parent=11 // pred_region
          _
        $region24: #{tpu_custom_call.1} parent=11 // pred_fallthru
          _
        // Predicated region
        $region25: #{tpu_custom_call.1} parent=11 // pred_check
          %p250 = pneg %p159
        $region26: #{tpu_custom_call.1} parent=11 // pred_check_branch
          %252 = sbr.rel (%p250) target = $region28
        $region27: #{tpu_custom_call.1} parent=11 // pred_region
          %s254 = ssub.s32 1024, 1024
          %255 = vsyncadd [#allocation9], %s254
          %s256 = sshll.u32 [#allocation10], 4
          %s257 = int_to_ptr.vmem [resolvable:$true] %s256
          %262 = dma.hbm_to_vmem [thread:$0]  %s5, 1024, %s257, [#allocation9], 64, 64, 4
        $region28: #{tpu_custom_call.1} parent=11 // pred_fallthru
          _
        // Predicated region
        $region29: #{tpu_custom_call.1} parent=11 // pred_check
          %p263 = pneg %p180
        $region30: #{tpu_custom_call.1} parent=11 // pred_check_branch
          %265 = sbr.rel (%p263) target = $region32
        $region31: #{tpu_custom_call.1} parent=11 // pred_region
          _
        $region32: #{tpu_custom_call.1} parent=11 // pred_fallthru
          _
      $region12: #{tpu_custom_call.1} parent=5 // pred_fallthru
        _
      %p266 = scmp.lt.s32.totalorder %s23, 2
      // Predicated region
      $region33: #{tpu_custom_call.1} parent=5 // pred_check
        %p267 = pneg %p266
      $region34: #{tpu_custom_call.1} parent=5 // pred_check_branch
        %269 = sbr.rel (%p267) target = $region36
      $region35: #{tpu_custom_call.1} parent=5 // pred_region
        // Predicated region
        $region37: #{tpu_custom_call.1} parent=35 // pred_check
          %p270 = pneg %p43
        $region38: #{tpu_custom_call.1} parent=35 // pred_check_branch
          %272 = sbr.rel (%p270) target = $region40
        $region39: #{tpu_custom_call.1} parent=35 // pred_region
          %s273 = sand.u32 %s33, 1
          %s274 = scalar_lea.sflag [#allocation3], %s273
          %s275 = sand.u32 %s33, 1
          %s276 = smul.addr %s275, 8
          %s277 = scalar_lea.vmem [#allocation2], %s276
          %s279 = ssub.s32 128, 128
          %280 = vsyncadd %s274, %s279
          %s281 = smul.addr %s23, 16
          %s282 = smul.addr %s281, 128
          %s283 = scalar_lea.hbm %s0, %s282
          %s285 = sshll.u32 %s277, 4
          %s286 = int_to_ptr.vmem [resolvable:$true] %s285
          %288 = dma.hbm_to_vmem [thread:$0]  %s283, 128, %s286, %s274
        $region40: #{tpu_custom_call.1} parent=35 // pred_fallthru
          _
        // Predicated region
        $region41: #{tpu_custom_call.1} parent=35 // pred_check
          %p289 = pneg %p69
        $region42: #{tpu_custom_call.1} parent=35 // pred_check_branch
          %291 = sbr.rel (%p289) target = $region44
        $region43: #{tpu_custom_call.1} parent=35 // pred_region
          %s292 = sand.u32 %s23, 1
          %s293 = scalar_lea.sflag [#allocation6], %s292
          %s294 = sand.u32 %s59, 1
          %s295 = smul.addr %s294, 8
          %s296 = scalar_lea.vmem [#allocation5], %s295
          %s298 = ssub.s32 128, 128
          %299 = vsyncadd %s293, %s298
          %s300 = smul.addr %s23, 16
          %s301 = sadd.s32 8, %s300
          %s302 = smul.addr %s301, 128
          %s303 = scalar_lea.hbm %s1, %s302
          %s305 = sshll.u32 %s296, 4
          %s306 = int_to_ptr.vmem [resolvable:$true] %s305
          %308 = dma.hbm_to_vmem [thread:$0]  %s303, 128, %s306, %s293
        $region44: #{tpu_custom_call.1} parent=35 // pred_fallthru
          _
      $region36: #{tpu_custom_call.1} parent=5 // pred_fallthru
        _
      %p309 = scmp.le.s32.totalorder 1, %s23
      %p310 = scmp.lt.s32.totalorder %s23, 3
      %p311 = pnand %p309, %p310
      %p312 = pneg %p311
      // Predicated region
      $region45: #{tpu_custom_call.1} parent=5 // pred_check
        _
      $region46: #{tpu_custom_call.1} parent=5 // pred_check_branch
        %314 = sbr.rel (%p311) target = $region48
      $region47: #{tpu_custom_call.1} parent=5 // pred_region
        %s315 = ssub.s32 %s23, 1
        %s316 = sand.u32 %s36, 1
        %s317 = scalar_lea.sflag [#allocation3], %s316
        %s318 = sand.u32 %s36, 1
        %s319 = smul.addr %s318, 8
        %s320 = scalar_lea.vmem [#allocation2], %s319
        // Predicated region
        $region49: #{tpu_custom_call.1} parent=47 // pred_check
          %p321 = pneg %p49
        $region50: #{tpu_custom_call.1} parent=47 // pred_check_branch
          %323 = sbr.rel (%p321) target = $region52
        $region51: #{tpu_custom_call.1} parent=47 // pred_region
          %324 = dma.done %s317, 128
        $region52: #{tpu_custom_call.1} parent=47 // pred_fallthru
          _
        %s325 = sand.u32 %s28, 1
        %s326 = scalar_lea.sflag [#allocation6], %s325
        %s327 = sand.u32 %s62, 1
        %s328 = smul.addr %s327, 8
        %s329 = scalar_lea.vmem [#allocation5], %s328
        // Predicated region
        $region53: #{tpu_custom_call.1} parent=47 // pred_check
          %p330 = pneg %p75
        $region54: #{tpu_custom_call.1} parent=47 // pred_check_branch
          %332 = sbr.rel (%p330) target = $region56
        $region55: #{tpu_custom_call.1} parent=47 // pred_region
          %333 = dma.done %s326, 128
        $region56: #{tpu_custom_call.1} parent=47 // pred_fallthru
          _
        // Predicated region
        $region57: #{tpu_custom_call.1} parent=47 // pred_check
          %p334 = pneg %p96
        $region58: #{tpu_custom_call.1} parent=47 // pred_check_branch
          %336 = sbr.rel (%p334) target = $region60
        $region59: #{tpu_custom_call.1} parent=47 // pred_region
          %337 = dma.done [#allocation6], 1024
        $region60: #{tpu_custom_call.1} parent=47 // pred_fallthru
          _
        // Predicated region
        $region61: #{tpu_custom_call.1} parent=47 // pred_check
          %p338 = pneg %p117
        $region62: #{tpu_custom_call.1} parent=47 // pred_check_branch
          %340 = sbr.rel (%p338) target = $region64
        $region63: #{tpu_custom_call.1} parent=47 // pred_region
          %341 = dma.done [#allocation9], 1024
        $region64: #{tpu_custom_call.1} parent=47 // pred_fallthru
          _
        // Predicated region
        $region65: #{tpu_custom_call.1} parent=47 // pred_check
          %p342 = pneg %p159
        $region66: #{tpu_custom_call.1} parent=47 // pred_check_branch
          %344 = sbr.rel (%p342) target = $region68
        $region67: #{tpu_custom_call.1} parent=47 // pred_region
          %345 = dma.done [#allocation9], 1024
        $region68: #{tpu_custom_call.1} parent=47 // pred_fallthru
          _
        %s346 = sand.u32 %s36, 1
        %s347 = scalar_lea.sflag [#allocation3], %s346
        %s348 = sand.u32 %s36, 1
        %s349 = smul.addr %s348, 8
        %s350 = scalar_lea.vmem [#allocation2], %s349
        %p351 = pneg %p49
        %p352 = pneg %p46
        %s353 = sand.u32 %s28, 1
        %s354 = scalar_lea.sflag [#allocation6], %s353
        %s355 = sand.u32 %s62, 1
        %s356 = smul.addr %s355, 8
        %s357 = scalar_lea.vmem [#allocation5], %s356
        %p358 = pneg %p75
        %p359 = pneg %p72
        %p360 = pneg %p96
        %p361 = pneg %p93
        %p362 = pneg %p117
        %p363 = pneg %p114
        %p364 = pneg %p138
        %p365 = pneg %p135
        %p366 = pneg %p159
        %p367 = pneg %p156
        %p368 = pneg %p180
        %p369 = pneg %p177
        %p370 = pneg %p206
        %p371 = pneg %p203
        %s372 = sand.u32 %s193, 1
        %s373 = scalar_lea.sflag [#allocation4], %s372
        %s374 = sand.u32 %s193, 1
        %s375 = smul.addr %s374, 8
        %s376 = scalar_lea.vmem [#allocation11], %s375
        %v378 = vld [vmem:[%s320] sm:$0xff]
        %v379 = vpack.c.bf16 %v378, %v378
        %v380 = vld [vmem:[%s329] sm:$0xff]
        %v381 = vpack.c.bf16 %v380, %v380
        %v382 = vld [vmem:[#allocation7] sm:$0xf]
        %v383 = vld [vmem:[#allocation7 + $0x4] sm:$0xf]
        %v384 = vld [vmem:[#allocation7 + $0x8] sm:$0xf]
        %v385 = vld [vmem:[#allocation7 + $0xc] sm:$0xf]
        %v386 = vld [vmem:[#allocation7 + $0x10] sm:$0xf]
        %v387 = vld [vmem:[#allocation7 + $0x14] sm:$0xf]
        %v388 = vld [vmem:[#allocation7 + $0x18] sm:$0xf]
        %v389 = vld [vmem:[#allocation7 + $0x1c] sm:$0xf]
        %v390 = vld [vmem:[#allocation7 + $0x20] sm:$0xf]
        %v391 = vld [vmem:[#allocation7 + $0x24] sm:$0xf]
        %v392 = vld [vmem:[#allocation7 + $0x28] sm:$0xf]
        %v393 = vld [vmem:[#allocation7 + $0x2c] sm:$0xf]
        %v394 = vld [vmem:[#allocation7 + $0x30] sm:$0xf]
        %v395 = vld [vmem:[#allocation7 + $0x34] sm:$0xf]
        %v396 = vld [vmem:[#allocation7 + $0x38] sm:$0xf]
        %v397 = vld [vmem:[#allocation7 + $0x3c] sm:$0xf]
        %v398 = vld [vmem:[#allocation8] sm:$0xf]
        %v399 = vld [vmem:[#allocation8 + $0x4] sm:$0xf]
        %v400 = vld [vmem:[#allocation8 + $0x8] sm:$0xf]
        %v401 = vld [vmem:[#allocation8 + $0xc] sm:$0xf]
        %v402 = vld [vmem:[#allocation8 + $0x10] sm:$0xf]
        %v403 = vld [vmem:[#allocation8 + $0x14] sm:$0xf]
        %v404 = vld [vmem:[#allocation8 + $0x18] sm:$0xf]
        %v405 = vld [vmem:[#allocation8 + $0x1c] sm:$0xf]
        %v406 = vld [vmem:[#allocation8 + $0x20] sm:$0xf]
        %v407 = vld [vmem:[#allocation8 + $0x24] sm:$0xf]
        %v408 = vld [vmem:[#allocation8 + $0x28] sm:$0xf]
        %v409 = vld [vmem:[#allocation8 + $0x2c] sm:$0xf]
        %v410 = vld [vmem:[#allocation8 + $0x30] sm:$0xf]
        %v411 = vld [vmem:[#allocation8 + $0x34] sm:$0xf]
        %v412 = vld [vmem:[#allocation8 + $0x38] sm:$0xf]
        %v413 = vld [vmem:[#allocation8 + $0x3c] sm:$0xf]
        %v430 = vunpack.c.l.b16 %v398
        %v431 = vunpack.c.l.b16 %v399
        %v432 = vunpack.c.l.b16 %v400
        %v433 = vunpack.c.l.b16 %v401
        %v434 = vunpack.c.l.b16 %v402
        %v435 = vunpack.c.l.b16 %v403
        %v436 = vunpack.c.l.b16 %v404
        %v437 = vunpack.c.l.b16 %v405
        %v438 = vunpack.c.l.b16 %v406
        %v439 = vunpack.c.l.b16 %v407
        %v440 = vunpack.c.l.b16 %v408
        %v441 = vunpack.c.l.b16 %v409
        %v442 = vunpack.c.l.b16 %v410
        %v443 = vunpack.c.l.b16 %v411
        %v444 = vunpack.c.l.b16 %v412
        %v445 = vunpack.c.l.b16 %v413
        %v446 = vpack.c.b16 %v431, %v430
        %v447 = vpack.c.b16 %v433, %v432
        %v448 = vpack.c.b16 %v435, %v434
        %v449 = vpack.c.b16 %v437, %v436
        %v450 = vpack.c.b16 %v439, %v438
        %v451 = vpack.c.b16 %v441, %v440
        %v452 = vpack.c.b16 %v443, %v442
        %v453 = vpack.c.b16 %v445, %v444
        %462 = vmatprep.subr.bf16.mxu0 0
        %463 = vmatpush1.bf16.msra.mxu0 %v446
        %464 = vmatprep.subr.bf16.mxu0 0
        %465 = vmatpush1.bf16.msra.mxu0 %v447
        %466 = vmatprep.subr.bf16.mxu0 0
        %467 = vmatpush1.bf16.msra.mxu0 %v448
        %468 = vmatprep.subr.bf16.mxu0 0
        %469 = vmatpush1.bf16.msra.mxu0 %v449
        %470 = vmatprep.subr.bf16.mxu0 0
        %471 = vmatpush1.bf16.msra.mxu0 %v450
        %472 = vmatprep.subr.bf16.mxu0 0
        %473 = vmatpush1.bf16.msra.mxu0 %v451
        %474 = vmatprep.subr.bf16.mxu0 0
        %475 = vmatpush1.bf16.msra.mxu0 %v452
        %476 = vmatprep.subr.bf16.mxu0 0
        %477 = vmatpush1.bf16.msra.mxu0 %v453
        %478 = vmatprep.subr.bf16.mxu0 0
        %479 = vmatpush1.bf16.msra.mxu0 0
        %480 = vmatprep.subr.bf16.mxu0 0
        %481 = vmatpush1.bf16.msra.mxu0 0
        %482 = vmatprep.subr.bf16.mxu0 0
        %483 = vmatpush1.bf16.msra.mxu0 0
        %484 = vmatprep.subr.bf16.mxu0 0
        %485 = vmatpush1.bf16.msra.mxu0 0
        %486 = vmatprep.subr.bf16.mxu0 0
        %487 = vmatpush1.bf16.msra.mxu0 0
        %488 = vmatprep.subr.bf16.mxu0 0
        %489 = vmatpush1.bf16.msra.mxu0 0
        %490 = vmatprep.subr.bf16.mxu0 0
        %491 = vmatpush1.bf16.msra.mxu0 0
        %492 = vmatprep.subr.bf16.mxu0 0
        %493 = vmatpush1.bf16.msra.mxu0 0
        %494 = vmatprep.mubr.bf16.mxu0 0
        %495 = vmatmul.mubr.bf16.gmra.mrb[0].mxu0 %v381
        %v496 = vpop.f32.mrb[0].mxu0
        %v497 = vadd.f32 0.0, %v496
        %v498 = vpop.f32.mrb[0].mxu0
        %v499 = vpop.f32.mrb[0].mxu0
        %v500 = vpop.f32.mrb[0].mxu0
        %501 = vdwg.mxu0
        %v518 = vunpack.c.l.b16 %v382
        %v519 = vunpack.c.l.b16 %v383
        %v520 = vunpack.c.l.b16 %v384
        %v521 = vunpack.c.l.b16 %v385
        %v522 = vunpack.c.l.b16 %v386
        %v523 = vunpack.c.l.b16 %v387
        %v524 = vunpack.c.l.b16 %v388
        %v525 = vunpack.c.l.b16 %v389
        %v526 = vunpack.c.l.b16 %v390
        %v527 = vunpack.c.l.b16 %v391
        %v528 = vunpack.c.l.b16 %v392
        %v529 = vunpack.c.l.b16 %v393
        %v530 = vunpack.c.l.b16 %v394
        %v531 = vunpack.c.l.b16 %v395
        %v532 = vunpack.c.l.b16 %v396
        %v533 = vunpack.c.l.b16 %v397
        %v534 = vpack.c.b16 %v519, %v518
        %v535 = vpack.c.b16 %v521, %v520
        %v536 = vpack.c.b16 %v523, %v522
        %v537 = vpack.c.b16 %v525, %v524
        %v538 = vpack.c.b16 %v527, %v526
        %v539 = vpack.c.b16 %v529, %v528
        %v540 = vpack.c.b16 %v531, %v530
        %v541 = vpack.c.b16 %v533, %v532
        %550 = vmatprep.subr.bf16.mxu0 0
        %551 = vmatpush1.bf16.msra.mxu0 %v534
        %552 = vmatprep.subr.bf16.mxu0 0
        %553 = vmatpush1.bf16.msra.mxu0 %v535
        %554 = vmatprep.subr.bf16.mxu0 0
        %555 = vmatpush1.bf16.msra.mxu0 %v536
        %556 = vmatprep.subr.bf16.mxu0 0
        %557 = vmatpush1.bf16.msra.mxu0 %v537
        %558 = vmatprep.subr.bf16.mxu0 0
        %559 = vmatpush1.bf16.msra.mxu0 %v538
        %560 = vmatprep.subr.bf16.mxu0 0
        %561 = vmatpush1.bf16.msra.mxu0 %v539
        %562 = vmatprep.subr.bf16.mxu0 0
        %563 = vmatpush1.bf16.msra.mxu0 %v540
        %564 = vmatprep.subr.bf16.mxu0 0
        %565 = vmatpush1.bf16.msra.mxu0 %v541
        %566 = vmatprep.subr.bf16.mxu0 0
        %567 = vmatpush1.bf16.msra.mxu0 0
        %568 = vmatprep.subr.bf16.mxu0 0
        %569 = vmatpush1.bf16.msra.mxu0 0
        %570 = vmatprep.subr.bf16.mxu0 0
        %571 = vmatpush1.bf16.msra.mxu0 0
        %572 = vmatprep.subr.bf16.mxu0 0
        %573 = vmatpush1.bf16.msra.mxu0 0
        %574 = vmatprep.subr.bf16.mxu0 0
        %575 = vmatpush1.bf16.msra.mxu0 0
        %576 = vmatprep.subr.bf16.mxu0 0
        %577 = vmatpush1.bf16.msra.mxu0 0
        %578 = vmatprep.subr.bf16.mxu0 0
        %579 = vmatpush1.bf16.msra.mxu0 0
        %580 = vmatprep.subr.bf16.mxu0 0
        %581 = vmatpush1.bf16.msra.mxu0 0
        %582 = vmatprep.mubr.bf16.mxu0 0
        %583 = vmatmul.mubr.bf16.gmra.mrb[0].mxu0 %v379
        %v584 = vpop.f32.mrb[0].mxu0
        %v585 = vadd.f32 %v497, %v584
        %v586 = vpop.f32.mrb[0].mxu0
        %v587 = vpop.f32.mrb[0].mxu0
        %v588 = vpop.f32.mrb[0].mxu0
        %589 = vdwg.mxu0
        %v590 = vld [vmem:[%s4] sm:$0x1]
        %v592 = vlaneseq
        %v593 = vshrl.u32 %v592, 7
        %v594 = vsub.s32 0, %v593
        %v595 = vrot.slane %v590, %v594
        %v597 = vadd.f32 %v585, %v595
        %v598 = vtanh.pop %v597
        %v599 = vpack.c.bf16 %v598, %v598
        %v600 = vld [vmem:[#allocation10] sm:$0xf]
        %v601 = vld [vmem:[#allocation10 + $0x4] sm:$0xf]
        %v602 = vld [vmem:[#allocation10 + $0x8] sm:$0xf]
        %v603 = vld [vmem:[#allocation10 + $0xc] sm:$0xf]
        %v604 = vld [vmem:[#allocation10 + $0x10] sm:$0xf]
        %v605 = vld [vmem:[#allocation10 + $0x14] sm:$0xf]
        %v606 = vld [vmem:[#allocation10 + $0x18] sm:$0xf]
        %v607 = vld [vmem:[#allocation10 + $0x1c] sm:$0xf]
        %v608 = vld [vmem:[#allocation10 + $0x20] sm:$0xf]
        %v609 = vld [vmem:[#allocation10 + $0x24] sm:$0xf]
        %v610 = vld [vmem:[#allocation10 + $0x28] sm:$0xf]
        %v611 = vld [vmem:[#allocation10 + $0x2c] sm:$0xf]
        %v612 = vld [vmem:[#allocation10 + $0x30] sm:$0xf]
        %v613 = vld [vmem:[#allocation10 + $0x34] sm:$0xf]
        %v614 = vld [vmem:[#allocation10 + $0x38] sm:$0xf]
        %v615 = vld [vmem:[#allocation10 + $0x3c] sm:$0xf]
        %v616 = vld [vmem:[%s6] sm:$0x1]
        %v618 = vlaneseq
        %v619 = vshrl.u32 %v618, 7
        %v620 = vsub.s32 0, %v619
        %v621 = vrot.slane %v616, %v620
        %v639 = vunpack.c.l.b16 %v600
        %v640 = vunpack.c.l.b16 %v601
        %v641 = vunpack.c.l.b16 %v602
        %v642 = vunpack.c.l.b16 %v603
        %v643 = vunpack.c.l.b16 %v604
        %v644 = vunpack.c.l.b16 %v605
        %v645 = vunpack.c.l.b16 %v606
        %v646 = vunpack.c.l.b16 %v607
        %v647 = vunpack.c.l.b16 %v608
        %v648 = vunpack.c.l.b16 %v609
        %v649 = vunpack.c.l.b16 %v610
        %v650 = vunpack.c.l.b16 %v611
        %v651 = vunpack.c.l.b16 %v612
        %v652 = vunpack.c.l.b16 %v613
        %v653 = vunpack.c.l.b16 %v614
        %v654 = vunpack.c.l.b16 %v615
        %v655 = vpack.c.b16 %v640, %v639
        %v656 = vpack.c.b16 %v642, %v641
        %v657 = vpack.c.b16 %v644, %v643
        %v658 = vpack.c.b16 %v646, %v645
        %v659 = vpack.c.b16 %v648, %v647
        %v660 = vpack.c.b16 %v650, %v649
        %v661 = vpack.c.b16 %v652, %v651
        %v662 = vpack.c.b16 %v654, %v653
        %671 = vmatprep.subr.bf16.mxu0 0
        %672 = vmatpush1.bf16.msra.mxu0 %v655
        %673 = vmatprep.subr.bf16.mxu0 0
        %674 = vmatpush1.bf16.msra.mxu0 %v656
        %675 = vmatprep.subr.bf16.mxu0 0
        %676 = vmatpush1.bf16.msra.mxu0 %v657
        %677 = vmatprep.subr.bf16.mxu0 0
        %678 = vmatpush1.bf16.msra.mxu0 %v658
        %679 = vmatprep.subr.bf16.mxu0 0
        %680 = vmatpush1.bf16.msra.mxu0 %v659
        %681 = vmatprep.subr.bf16.mxu0 0
        %682 = vmatpush1.bf16.msra.mxu0 %v660
        %683 = vmatprep.subr.bf16.mxu0 0
        %684 = vmatpush1.bf16.msra.mxu0 %v661
        %685 = vmatprep.subr.bf16.mxu0 0
        %686 = vmatpush1.bf16.msra.mxu0 %v662
        %687 = vmatprep.subr.bf16.mxu0 0
        %688 = vmatpush1.bf16.msra.mxu0 0
        %689 = vmatprep.subr.bf16.mxu0 0
        %690 = vmatpush1.bf16.msra.mxu0 0
        %691 = vmatprep.subr.bf16.mxu0 0
        %692 = vmatpush1.bf16.msra.mxu0 0
        %693 = vmatprep.subr.bf16.mxu0 0
        %694 = vmatpush1.bf16.msra.mxu0 0
        %695 = vmatprep.subr.bf16.mxu0 0
        %696 = vmatpush1.bf16.msra.mxu0 0
        %697 = vmatprep.subr.bf16.mxu0 0
        %698 = vmatpush1.bf16.msra.mxu0 0
        %699 = vmatprep.subr.bf16.mxu0 0
        %700 = vmatpush1.bf16.msra.mxu0 0
        %701 = vmatprep.subr.bf16.mxu0 0
        %702 = vmatpush1.bf16.msra.mxu0 0
        %703 = vmatprep.mubr.bf16.mxu0 0
        %704 = vmatmul.mubr.bf16.gmra.mrb[0].mxu0 %v599
        %v705 = vpop.f32.mrb[0].mxu0
        %v706 = vadd.f32 %v621, %v705
        %v707 = vpop.f32.mrb[0].mxu0
        %v708 = vpop.f32.mrb[0].mxu0
        %v709 = vpop.f32.mrb[0].mxu0
        %710 = vdwg.mxu0
        %711 = vst [vmem:[%s376] sm:$0xff] %v706
        %s712 = sand.u32 %s193, 1
        %s713 = scalar_lea.sflag [#allocation4], %s712
        %s714 = sand.u32 %s193, 1
        %s715 = smul.addr %s714, 8
        %s716 = scalar_lea.vmem [#allocation11], %s715
        // Predicated region
        $region69: #{tpu_custom_call.1} parent=47 // pred_check
          %p717 = pneg %p203
        $region70: #{tpu_custom_call.1} parent=47 // pred_check_branch
          %719 = sbr.rel (%p717) target = $region72
        $region71: #{tpu_custom_call.1} parent=47 // pred_region
          %s721 = ssub.s32 128, 128
          %722 = vsyncadd %s713, %s721
          %s723 = smul.addr %s28, 128
          %s724 = scalar_lea.hbm %s7, %s723
          %s726 = sshll.u32 %s716, 4
          %s727 = int_to_ptr.vmem [resolvable:$true] %s726
          %729 = dma.vmem_to_hbm [thread:$0]  %s727, 128, %s724, %s713
        $region72: #{tpu_custom_call.1} parent=47 // pred_fallthru
          _
      $region48: #{tpu_custom_call.1} parent=5 // pred_fallthru
        _
      %p730 = scmp.le.s32.totalorder 2, %s23
      // Predicated region
      $region73: #{tpu_custom_call.1} parent=5 // pred_check
        %p731 = pneg %p730
      $region74: #{tpu_custom_call.1} parent=5 // pred_check_branch
        %733 = sbr.rel (%p731) target = $region76
      $region75: #{tpu_custom_call.1} parent=5 // pred_region
        %s734 = ssub.s32 %s23, 2
        // Predicated region
        $region77: #{tpu_custom_call.1} parent=75 // pred_check
          %p735 = pneg %p209
        $region78: #{tpu_custom_call.1} parent=75 // pred_check_branch
          %737 = sbr.rel (%p735) target = $region80
        $region79: #{tpu_custom_call.1} parent=75 // pred_region
          %s738 = sand.u32 %s194, 1
          %s739 = scalar_lea.sflag [#allocation4], %s738
          %s740 = sand.u32 %s194, 1
          %s741 = smul.addr %s740, 8
          %s742 = scalar_lea.vmem [#allocation11], %s741
          %743 = dma.done %s739, 128
        $region80: #{tpu_custom_call.1} parent=75 // pred_fallthru
          _
      $region76: #{tpu_custom_call.1} parent=5 // pred_fallthru
        _
    $region6: #{tpu_custom_call.1} parent=1 // loop_footer
      %s27 = sadd.s32 1, %s23
    $region7: #{tpu_custom_call.1} parent=1 // loop_footer_branch
      %22 = sbr.rel target = $region3
    $region8: #{tpu_custom_call.1} parent=1 // loop_exit
      _
    %744 = vsyncpa [#allocation3], 1
    %s745 = scalar_lea.sflag [#allocation3], 1
    %746 = vsyncpa %s745, 1
    %747 = vsyncpa [#allocation6], 1
    %s748 = scalar_lea.sflag [#allocation6], 1
    %749 = vsyncpa %s748, 1
    %750 = vsyncpa [#allocation9], 1
    %751 = vsyncpa [#allocation4], 1
    %s752 = scalar_lea.sflag [#allocation4], 1
    %753 = vsyncpa %s752, 1

</llo_original>
